<compile_context>
chip_gen: v7x
topology: tpu7x:2x2x1
jax: 0.10.0
libtpu: 0.0.40
codegen_flags: <defaults>
</compile_context>

<pallas_src>
import functools

import jax
import jax.numpy as jnp
from jax import lax
from jax.experimental import pallas as pl
from jax.experimental.pallas import tpu as pltpu


def _round_up(x, m):
    return (x + m - 1) // m * m


def _conv_gemm_kernel(p_ref, w_ref, b_ref, o_ref, *, precision):
    # p_ref: (tm, K)  im2col patch rows for this tile (streamed over M)
    # w_ref: (K, Np)  reshaped conv weight (resident across the grid)
    # b_ref: (1, Np)  conv bias, f32 (resident)
    # o_ref: (tm, Np)
    acc = jnp.dot(p_ref[...], w_ref[...], precision=precision,
                  preferred_element_type=jnp.float32)
    o_ref[...] = (acc + b_ref[...]).astype(o_ref.dtype)


def hybrid_embed_forward(x, conv_w, conv_b, *, stride,
                         compute_dtype=jnp.bfloat16,
                         out_dtype=jnp.bfloat16,
                         block_m=1024):
    """x: (B, C, H, W) NCHW.  conv_w: (Cout, Cin, k, k).  conv_b: (Cout,).

    compute_dtype: dtype fed to the MXU (bf16 default; accumulation is f32).
    out_dtype:     dtype of the returned embedding (bf16 default; the output
                   store dominates HBM traffic, so halving it ~halves wall time).
    """
    B, C, H, W = x.shape
    Cout, Cin, kh, kw = conv_w.shape
    assert C == Cin and kh == kw == stride
    assert H % stride == 0 and W % stride == 0
    Hf, Wf = H // stride, W // stride

    # --- glue: im2col (non-overlapping patches, order = (C, kh, kw)) --------
    # TODO(synk): for a real multi-layer CNN backbone the conv stack itself is
    # run outside this kernel; only the final projection/flatten is fused here.
    patches = x.reshape(B, C, Hf, kh, Wf, kw)
    patches = jnp.transpose(patches, (0, 2, 4, 1, 3, 5))       # (B,Hf,Wf,C,kh,kw)
    patches = patches.reshape(B * Hf * Wf, C * kh * kw)        # (M, K)
    patches = patches.astype(compute_dtype)

    w2d = conv_w.reshape(Cout, Cin * kh * kw).T.astype(compute_dtype)  # (K, N)
    b2d = conv_b.reshape(1, Cout).astype(jnp.float32)                  # (1, N)

    M, K = patches.shape
    N = Cout

    # Lane-dense output: pad N (feature_dim) up to a multiple of 128 so output
    # stores are full vst rather than masked partial stores.  The zero weight /
    # bias columns are sliced away after the call (no-op when N % 128 == 0).
    Np = _round_up(N, 128)
    if Np != N:
        w2d = jnp.pad(w2d, ((0, 0), (0, Np - N)))
        b2d = jnp.pad(b2d, ((0, 0), (0, Np - N)))

    # --- M tiling ------------------------------------------------------------
    tm = min(block_m, _round_up(M, 8))
    # Keep >= 2 grid steps for medium M: lets the "parallel" axis megacore-shard
    # on v7x and gives the DMA pipeline something to overlap.
    if pl.cdiv(M, tm) == 1 and M >= 128:
        tm = _round_up(pl.cdiv(M, 2), 8)
    Mp = _round_up(M, tm)          # pad M to a multiple of tm: no OOB last block
    if Mp != M:
        patches = jnp.pad(patches, ((0, Mp - M), (0, 0)))
    grid = (Mp // tm,)

    in_bytes = jnp.dtype(compute_dtype).itemsize
    out_bytes = jnp.dtype(out_dtype).itemsize

    # Explicit scoped-VMEM budget: double-buffered patch + output tiles, plus
    # the resident weight/bias allocations, with 2x headroom.  Floored at
    # 32 MiB (covers v5e's 16 MiB default when sweeping tm up), capped at
    # 56 MiB to stay inside v7x's 64 MiB per-TC VMEM.
    vmem_need = (2 * tm * K * in_bytes          # patch double-buffer
                 + 2 * tm * Np * out_bytes      # output double-buffer
                 + 2 * K * Np * in_bytes        # resident weight
                 + 2 * Np * 4)                  # resident bias
    vmem_limit = int(min(max(2 * vmem_need, 32 << 20), 56 << 20))

    cost = pl.CostEstimate(
        flops=2 * M * K * Np,
        transcendentals=0,
        bytes_accessed=(M * K * in_bytes + K * Np * in_bytes
                        + Np * 4 + M * Np * out_bytes))

    precision = (lax.Precision.HIGHEST
                 if jnp.dtype(compute_dtype) == jnp.float32 else None)
    kernel = functools.partial(_conv_gemm_kernel, precision=precision)

    # Weight/bias keep constant index_maps (no re-DMA across the grid).
    # (pipeline_mode=pl.Buffered(1) would reclaim their second buffer, but the
    #  few hundred KiB saved is irrelevant at these shapes.)
    out = pl.pallas_call(
        kernel,
        out_shape=jax.ShapeDtypeStruct((Mp, Np), out_dtype),
        grid=grid,
        in_specs=[
            pl.BlockSpec((tm, K), lambda i: (i, 0)),    # streamed over M
            pl.BlockSpec((K, Np), lambda i: (0, 0)),    # resident weight
            pl.BlockSpec((1, Np), lambda i: (0, 0)),    # resident bias
        ],
        out_specs=pl.BlockSpec((tm, Np), lambda i: (i, 0)),
        compiler_params=pltpu.CompilerParams(
            # Single independent M axis -> megacore-shardable on v7x.
            dimension_semantics=("parallel",),
            vmem_limit_bytes=vmem_limit,
        ),
        cost_estimate=cost,
    )(patches, w2d, b2d)

    if Mp != M or Np != N:
        # TODO(synk): for arbitrary (non-multiple-of-128) feature dims this
        # slice is one extra pass over the output; a masked store on the
        # trailing N block would avoid it.
        out = out[:M, :N]
    # (B, num_patches, feature_dim) == flatten(2).transpose(1, 2) of conv out.
    return out.reshape(B, Hf * Wf, N)


def _reference(x, conv_w, conv_b, *, stride):
    """Pure-JAX reference matching the PyTorch forward semantics."""
    y = lax.conv_general_dilated(
        x, conv_w, window_strides=(stride, stride), padding="VALID",
        dimension_numbers=("NCHW", "OIHW", "NCHW"))
    y = y + conv_b.reshape(1, -1, 1, 1)
    B, Cf, Hf, Wf = y.shape
    return jnp.transpose(y.reshape(B, Cf, Hf * Wf), (0, 2, 1))


if __name__ == "__main__":
    # Small shapes: batch=2, in_chans=4, img=16x16, backbone stride/kernel=4,
    # feature_dim (embed) = 32  ->  num_patches = 16.
    B, C, H, W = 2, 4, 16, 16
    stride = 4
    feature_dim = 32

    key = jax.random.PRNGKey(0)
    kx, kw, kb = jax.random.split(key, 3)
    x = jax.random.normal(kx, (B, C, H, W), dtype=jnp.float32)
    conv_w = jax.random.normal(kw, (feature_dim, C, stride, stride),
                               dtype=jnp.float32) * 0.05
    conv_b = jax.random.normal(kb, (feature_dim,), dtype=jnp.float32) * 0.05

    fwd = jax.jit(hybrid_embed_forward,
                  static_argnames=("stride", "compute_dtype", "out_dtype",
                                   "block_m"))

    ref = _reference(x, conv_w, conv_b, stride=stride)
    expected_shape = (B, (H // stride) * (W // stride), feature_dim)

    # Default (bf16 I/O, f32 accumulation) path — bandwidth-optimized.
    out_bf16 = fwd(x, conv_w, conv_b, stride=stride)
    out_bf16 = jax.block_until_ready(out_bf16)
    assert out_bf16.shape == expected_shape
    assert out_bf16.dtype == jnp.bfloat16
    assert jnp.allclose(out_bf16.astype(jnp.float32), ref, atol=5e-2, rtol=5e-2)

    # f32 path (exact check against the conv reference, HIGHEST precision MXU).
    out_f32 = fwd(x, conv_w, conv_b, stride=stride,
                  compute_dtype=jnp.float32, out_dtype=jnp.float32)
    out_f32 = jax.block_until_ready(out_f32)
    assert out_f32.shape == expected_shape
    assert jnp.allclose(out_f32, ref, atol=1e-4, rtol=1e-4)

    print("KERNEL_OK")
</pallas_src>

<mosaic_0001>
module attributes {stable_mosaic.version = 11 : i64} {
  func.func @_conv_gemm_kernel(%arg0: i32, %arg1: memref<32x64xbf16, #tpu.memory_space<vmem>>, %arg2: memref<64x128xbf16, #tpu.memory_space<vmem>>, %arg3: memref<1x128xf32, #tpu.memory_space<vmem>>, %arg4: memref<32x128xbf16, #tpu.memory_space<vmem>>) attributes {dimension_semantics = [#tpu.dimension_semantics<parallel>], iteration_bounds = array<i64: 1>, scalar_prefetch = 0 : i64, scratch_operands = 0 : i64, tpu.core_type = #tpu.core_type<tc>, window_params = [{transform_indices = @transform_0, window_bounds = array<i64: 32, 64>}, {pipeline_mode = #tpu.pipeline_mode<synchronous>, transform_indices = @transform_1, window_bounds = array<i64: 64, 128>}, {pipeline_mode = #tpu.pipeline_mode<synchronous>, transform_indices = @transform_2, window_bounds = array<i64: 1, 128>}, {transform_indices = @transform_3, window_bounds = array<i64: 32, 128>}]} {
    %c0 = arith.constant 0 : index
    %c0_0 = arith.constant 0 : index
    %0 = vector.load %arg1[%c0, %c0_0] : memref<32x64xbf16, #tpu.memory_space<vmem>>, vector<32x64xbf16>
    %c0_1 = arith.constant 0 : index
    %c0_2 = arith.constant 0 : index
    %1 = vector.load %arg2[%c0_1, %c0_2] : memref<64x128xbf16, #tpu.memory_space<vmem>>, vector<64x128xbf16>
    %cst = arith.constant dense<0.000000e+00> : vector<32x128xf32>
    %2 = tpu.matmul %0, %1, %cst {dimension_numbers = #tpu.dot_dimension_numbers<[1], [0], [0], [1], [0, 0, 1, 1], [], []>} : vector<32x64xbf16>, vector<64x128xbf16>, vector<32x128xf32> -> vector<32x128xf32>
    %c0_3 = arith.constant 0 : index
    %c0_4 = arith.constant 0 : index
    %3 = vector.load %arg3[%c0_3, %c0_4] : memref<1x128xf32, #tpu.memory_space<vmem>>, vector<1x128xf32>
    %4 = vector.broadcast %3 : vector<1x128xf32> to vector<32x128xf32>
    %5 = arith.addf %2, %4 : vector<32x128xf32>
    %6 = arith.truncf %5 : vector<32x128xf32> to vector<32x128xbf16>
    %c0_5 = arith.constant 0 : index
    %c0_6 = arith.constant 0 : index
    %7 = vector.load %arg4[%c0_5, %c0_6] : memref<32x128xbf16, #tpu.memory_space<vmem>>, vector<32x128xbf16>
    tpu.vector_store %arg4[%c0_5, %c0_6], %6 {strides = array<i32>} : memref<32x128xbf16, #tpu.memory_space<vmem>>, vector<32x128xbf16>,
    return
  }
  func.func @transform_0(%arg0: i32) -> (i32, i32) {
    %c0_i32 = arith.constant 0 : i32
    %c0_i32_0 = arith.constant 0 : i32
    return %arg0, %c0_i32 : i32, i32
  }
  func.func @transform_1(%arg0: i32) -> (i32, i32) {
    %c0_i32 = arith.constant 0 : i32
    %c0_i32_0 = arith.constant 0 : i32
    %c0_i32_1 = arith.constant 0 : i32
    return %c0_i32, %c0_i32_0 : i32, i32
  }
  func.func @transform_2(%arg0: i32) -> (i32, i32) {
    %c0_i32 = arith.constant 0 : i32
    %c0_i32_0 = arith.constant 0 : i32
    %c0_i32_1 = arith.constant 0 : i32
    return %c0_i32, %c0_i32_0 : i32, i32
  }
  func.func @transform_3(%arg0: i32) -> (i32, i32) {
    %c0_i32 = arith.constant 0 : i32
    %c0_i32_0 = arith.constant 0 : i32
    return %arg0, %c0_i32 : i32, i32
  }
}

</mosaic_0001>

<llo_original>
// kernel: hybrid_embed_forward.1
$region0: #{hybrid_embed_forward.1}
  #allocation0 [shape = 'u32[]', space=smem, size = 0x4, offset = 0x4, fixed_abs, tag = 'smem constant byte address 0x4 - core index']
  #allocation1 [shape = 'u32[144,128]{1,0:T(1,128)}', space=vmem, size = 0x12000, scoped, tag = 'internal scratch']
  %s0 = inlined_call_operand.vmem [shape: bf16[32,64], index: 0, kind: input, shape index: {}]
  %s1 = inlined_call_operand.vmem [shape: bf16[64,128], index: 1, kind: input, shape index: {}]
  %s2 = inlined_call_operand.vmem [shape: f32[1,128], index: 2, kind: input, shape index: {}]
  %s3 = inlined_call_operand.hbm [shape: bf16[32,128], index: 3, kind: output, shape index: {}]
  %s4 = sld [smem:[#allocation0]]
  $region22: #{hybrid_embed_forward.1} parent=0
    _
  %s6 = ssub.s32 1, %s4
  %s7 = scalar_select 0, %s6, %s4
  $region1: #{hybrid_embed_forward.1} parent=0
    #allocation2 [shape = 'u8[8192]{0}', space=vmem, size = 0x2000, scoped, tag = 'output window, operand 0, single buffered']
    #allocation3 [shape = 's32[1]{0}', space=sflag, size = 0x4, scoped, tag = 'scoped memory for hybrid_embed_forward.1']
    %8 = vsyncpa [#allocation3], 0
    // Predicated region
    $region2: #{hybrid_embed_forward.1} parent=1 // pred_check
      _
    $region3: #{hybrid_embed_forward.1} parent=1 // pred_check_branch
      %10 = sbr.rel (0) target = $region5
    $region4: #{hybrid_embed_forward.1} parent=1 // pred_region
      _
    $region5: #{hybrid_embed_forward.1} parent=1 // pred_fallthru
      _
    // Predicated region
    $region6: #{hybrid_embed_forward.1} parent=1 // pred_check
      _
    $region7: #{hybrid_embed_forward.1} parent=1 // pred_check_branch
      %12 = sbr.rel (0) target = $region9
    $region8: #{hybrid_embed_forward.1} parent=1 // pred_region
      _
    $region9: #{hybrid_embed_forward.1} parent=1 // pred_fallthru
      _
    // Predicated region
    $region10: #{hybrid_embed_forward.1} parent=1 // pred_check
      _
    $region11: #{hybrid_embed_forward.1} parent=1 // pred_check_branch
      %14 = sbr.rel (0) target = $region13
    $region12: #{hybrid_embed_forward.1} parent=1 // pred_region
      _
    $region13: #{hybrid_embed_forward.1} parent=1 // pred_fallthru
      _
    %v16 = vld [vmem:[%s0] sm:$0xf]
    %v17 = vld [vmem:[%s0 + $0x4] sm:$0xf]
    %v18 = vld [vmem:[%s0 + $0x8] sm:$0xf]
    %v19 = vld [vmem:[%s0 + $0xc] sm:$0xf]
    %v20 = vld [vmem:[%s1] sm:$0xf]
    %v21 = vld [vmem:[%s1 + $0x4] sm:$0xf]
    %v22 = vld [vmem:[%s1 + $0x8] sm:$0xf]
    %v23 = vld [vmem:[%s1 + $0xc] sm:$0xf]
    %v24 = vld [vmem:[%s1 + $0x10] sm:$0xf]
    %v25 = vld [vmem:[%s1 + $0x14] sm:$0xf]
    %v26 = vld [vmem:[%s1 + $0x18] sm:$0xf]
    %v27 = vld [vmem:[%s1 + $0x1c] sm:$0xf]
    %v28 = vld [vmem:[%s2] sm:$0x1]
    %v30 = vlaneseq
    %v31 = vshrl.u32 %v30, 7
    %v32 = vsub.s32 0, %v31
    %v33 = vrot.slane %v28, %v32
    %v39 = vunpack.c.l.b16 %v16
    %v40 = vunpack.c.l.b16 %v17
    %v41 = vunpack.c.l.b16 %v18
    %v42 = vunpack.c.l.b16 %v19
    %v43 = vpack.c.b16 %v40, %v39
    %v44 = vpack.c.b16 %v42, %v41
    %v53 = vunpack.c.l.b16 %v20
    %v54 = vunpack.c.l.b16 %v21
    %v55 = vunpack.c.l.b16 %v22
    %v56 = vunpack.c.l.b16 %v23
    %v57 = vunpack.c.l.b16 %v24
    %v58 = vunpack.c.l.b16 %v25
    %v59 = vunpack.c.l.b16 %v26
    %v60 = vunpack.c.l.b16 %v27
    %v61 = vpack.c.b16 %v54, %v53
    %v62 = vpack.c.b16 %v56, %v55
    %v63 = vpack.c.b16 %v58, %v57
    %v64 = vpack.c.b16 %v60, %v59
    %vm69 = vcmask 523264
    %v71 = vsel %vm69, %v43, 0
    %v74 = vsel %vm69, %v44, 0
    %76 = vmatprep.subr.bf16.mxu0 0
    %77 = vmatpush1.bf16.msra.mxu0 %v61
    %78 = vmatprep.subr.bf16.mxu0 0
    %79 = vmatpush1.bf16.msra.mxu0 %v62
    %80 = vmatprep.subr.bf16.mxu0 0
    %81 = vmatpush1.bf16.msra.mxu0 %v63
    %82 = vmatprep.subr.bf16.mxu0 0
    %83 = vmatpush1.bf16.msra.mxu0 %v64
    %84 = vmatprep.subr.bf16.mxu0 0
    %85 = vmatpush1.bf16.msra.mxu0 0
    %86 = vmatprep.subr.bf16.mxu0 0
    %87 = vmatpush1.bf16.msra.mxu0 0
    %88 = vmatprep.subr.bf16.mxu0 0
    %89 = vmatpush1.bf16.msra.mxu0 0
    %90 = vmatprep.subr.bf16.mxu0 0
    %91 = vmatpush1.bf16.msra.mxu0 0
    %92 = vmatprep.subr.bf16.mxu0 0
    %93 = vmatpush1.bf16.msra.mxu0 0
    %94 = vmatprep.subr.bf16.mxu0 0
    %95 = vmatpush1.bf16.msra.mxu0 0
    %96 = vmatprep.subr.bf16.mxu0 0
    %97 = vmatpush1.bf16.msra.mxu0 0
    %98 = vmatprep.subr.bf16.mxu0 0
    %99 = vmatpush1.bf16.msra.mxu0 0
    %100 = vmatprep.subr.bf16.mxu0 0
    %101 = vmatpush1.bf16.msra.mxu0 0
    %102 = vmatprep.subr.bf16.mxu0 0
    %103 = vmatpush1.bf16.msra.mxu0 0
    %104 = vmatprep.subr.bf16.mxu0 0
    %105 = vmatpush1.bf16.msra.mxu0 0
    %106 = vmatprep.subr.bf16.mxu0 0
    %107 = vmatpush1.bf16.msra.mxu0 0
    %108 = vmatprep.mubr.bf16.mxu0 0
    %109 = vmatmul.mubr.bf16.gmra.mrb[0].mxu0 %v71
    %v110 = vpop.f32.mrb[0].mxu0
    %v111 = vadd.f32 %v33, %v110
    %v112 = vpop.f32.mrb[0].mxu0
    %v113 = vpop.f32.mrb[0].mxu0
    %v114 = vadd.f32 %v33, %v113
    %v115 = vpop.f32.mrb[0].mxu0
    %116 = vmatprep.mubr.bf16.mxu0 0
    %117 = vmatmul.mubr.bf16.gmra.mrb[0].mxu0 %v74
    %v118 = vpop.f32.mrb[0].mxu0
    %v119 = vadd.f32 %v33, %v118
    %v120 = vpop.f32.mrb[0].mxu0
    %v121 = vpop.f32.mrb[0].mxu0
    %v122 = vadd.f32 %v33, %v121
    %v123 = vpop.f32.mrb[0].mxu0
    %124 = vdwg.mxu0
    %v125 = vpack.c.bf16 %v114, %v111
    %v126 = vpack.c.bf16 %v122, %v119
    %v129 = vunpack.c.l.b16 %v125
    %v130 = vunpack.c.h.b16 %v125
    %v131 = vunpack.c.l.b16 %v126
    %v132 = vunpack.c.h.b16 %v126
    %v133 = vpack.c.b16 %v129, %v129
    %v134 = vpack.c.b16 %v130, %v130
    %v135 = vpack.c.b16 %v131, %v131
    %v136 = vpack.c.b16 %v132, %v132
    %141 = vst [vmem:[#allocation2] sm:$0xf] %v133
    %142 = vst [vmem:[#allocation2 + $0x4] sm:$0xf] %v134
    %143 = vst [vmem:[#allocation2 + $0x8] sm:$0xf] %v135
    %144 = vst [vmem:[#allocation2 + $0xc] sm:$0xf] %v136
    // Predicated region
    $region14: #{hybrid_embed_forward.1} parent=1 // pred_check
      _
    $region15: #{hybrid_embed_forward.1} parent=1 // pred_check_branch
      %146 = sbr.rel (0) target = $region17
    $region16: #{hybrid_embed_forward.1} parent=1 // pred_region
      %s148 = ssub.s32 256, 256
      %149 = vsyncadd [#allocation3], %s148
      %s150 = sshll.u32 [#allocation2], 4
      %s151 = int_to_ptr.vmem [resolvable:$true] %s150
      %156 = dma.vmem_to_hbm [thread:$0]  %s151, 256, %s3, [#allocation3], 64, 64, 4
    $region17: #{hybrid_embed_forward.1} parent=1 // pred_fallthru
      _
    // Predicated region
    $region18: #{hybrid_embed_forward.1} parent=1 // pred_check
      _
    $region19: #{hybrid_embed_forward.1} parent=1 // pred_check_branch
      %158 = sbr.rel (0) target = $region21
    $region20: #{hybrid_embed_forward.1} parent=1 // pred_region
      %159 = dma.done [#allocation3], 256
    $region21: #{hybrid_embed_forward.1} parent=1 // pred_fallthru
      _
    %160 = vsyncpa [#allocation3], 1

</llo_original>
